<compile_context>
chip_gen: v7x
topology: tpu7x:2x2x1
jax: 0.10.0
libtpu: 0.0.40
codegen_flags: <defaults>
</compile_context>

<pallas_src>
import functools

import jax
import jax.numpy as jnp
from jax.experimental import pallas as pl
from jax.experimental.pallas import tpu as pltpu


def _dece_kernel(x_ref, ptrue_ref, w_ref, b_ref, out_ref, *,
                 t_a, num_bins, eps, tm, m_total, needs_mask):
    t = pl.program_id(1)  # inner (reduction / "arbitrary") tile axis

    @pl.when(t == 0)
    def _():
        out_ref[...] = jnp.zeros_like(out_ref)

    p = x_ref[...]                                    # (tm, C) predicted probs
    p_true = ptrue_ref[...]                           # (tm, 1) prob of the true class

    # confidence = max prob per sample
    conf = jnp.max(p, axis=1, keepdims=True)          # (tm, 1)

    # true-class rank: sum_j sigmoid(t_a * (p[:, j] - p_true)) + 0.5
    # sigmoid(x) == 0.5 * (tanh(0.5*x) + 1): one EUP transcendental, no overflow.
    ind = 0.5 * (jnp.tanh((0.5 * t_a) * (p - p_true)) + 1.0)
    true_rank = jnp.sum(ind, axis=1, keepdims=True) + 0.5
    accs = jnp.maximum(2.0 - true_rank, 0.0)          # (tm, 1) soft "correct" indicator

    # soft bin assignment; 1/t_b is pre-folded into w_ref / b_ref.
    h = conf * w_ref[...] + b_ref[...]                # (tm, B)
    bp = jax.nn.softmax(h, axis=1)
    bp = (bp + eps) * (1.0 / (1.0 + (num_bins + 1) * eps))

    if needs_mask:
        # zero out padded (tail) rows; they then contribute nothing to any bin sum.
        row0 = (pl.program_id(0) * pl.num_programs(1) + t) * tm
        rows = row0 + jax.lax.broadcasted_iota(jnp.int32, (tm, 1), 0)
        bp = jnp.where(rows < m_total, bp, 0.0)

    # single (3, B) partial:  [sum_m bp, sum_m bp*conf, sum_m bp*acc]
    partial = jnp.concatenate([
        jnp.sum(bp, axis=0, keepdims=True),
        jnp.sum(bp * conf, axis=0, keepdims=True),
        jnp.sum(bp * accs, axis=0, keepdims=True),
    ], axis=0)                                        # (3, B)

    out_ref[...] += partial[None]                     # (1, 3, B) per-shard block


def dece_forward(inputs, target, *, num_bins, t_a, t_b, tm=512, num_shards=2):
    """inputs: (M, C) probs or (N, C, H, W) NCHW probs; target: matching int labels."""
    assert tm % 8 == 0
    x = jnp.asarray(inputs, jnp.float32)
    if x.ndim > 2:
        N, C = x.shape[0], x.shape[1]
        x = x.reshape(N, C, -1).transpose(0, 2, 1).reshape(-1, C)
    M, C = x.shape
    tgt = jnp.asarray(target).reshape(M, 1).astype(jnp.int32)
    p_true = jnp.take_along_axis(x, tgt, axis=1)      # (M, 1) prob of the true class

    B = num_bins
    cut_points = jnp.linspace(0.0, 1.0, B + 1)[:-1]
    # fold the 1/t_b temperature into the bin projection
    Wm = (jnp.linspace(1.0, float(B), B) / t_b).reshape(1, B).astype(jnp.float32)
    bm = (jnp.cumsum(-cut_points) / t_b).reshape(1, B).astype(jnp.float32)

    num_tiles = -(-M // tm)
    S = max(1, min(int(num_shards), num_tiles))       # shard axis (both TCs on v7x)
    tps = -(-num_tiles // S)                          # tiles per shard
    M_pad = S * tps * tm
    needs_mask = (M_pad != M)
    if needs_mask:
        pad = M_pad - M
        x = jnp.pad(x, ((0, pad), (0, 0)))
        p_true = jnp.pad(p_true, ((0, pad), (0, 0)))

    kernel = functools.partial(
        _dece_kernel, t_a=float(t_a), num_bins=B, eps=1e-6,
        tm=tm, m_total=M, needs_mask=needs_mask)

    row_map = lambda s, t: (s * tps + t, 0)
    partials = pl.pallas_call(
        kernel,
        out_shape=jax.ShapeDtypeStruct((S, 3, B), jnp.float32),
        grid_spec=pltpu.PrefetchScalarGridSpec(
            num_scalar_prefetch=0,
            grid=(S, tps),
            in_specs=[
                pl.BlockSpec((tm, C), row_map),        # probs tile
                pl.BlockSpec((tm, 1), row_map),        # true-class prob tile
                pl.BlockSpec((1, B), lambda s, t: (0, 0)),   # W' (resident)
                pl.BlockSpec((1, B), lambda s, t: (0, 0)),   # b' (resident)
            ],
            out_specs=pl.BlockSpec((1, 3, B), lambda s, t: (s, 0, 0)),
        ),
        compiler_params=pltpu.CompilerParams(
            dimension_semantics=("parallel", "arbitrary"),
            vmem_limit_bytes=32 * 1024 * 1024),
    )(x, p_true, Wm, bm)

    # tiny finalize in plain JAX: combine per-shard (3, B) partials -> scalar ECE
    sums = jnp.sum(partials, axis=0)                  # (3, B)
    sbp, sconf, sacc = sums[0], sums[1], sums[2]
    bin_confs = sconf / sbp
    bin_accs = sacc / sbp
    return jnp.sum(sbp * jnp.abs(bin_accs - bin_confs)) / M


def dece_reference(inputs, target, *, num_bins, t_a, t_b):
    """Pure-JAX transcription of the torch DECE.forward, for validation."""
    x = jnp.asarray(inputs, jnp.float32)
    if x.ndim > 2:
        N, C = x.shape[0], x.shape[1]
        x = x.reshape(N, C, -1).transpose(0, 2, 1).reshape(-1, C)
    M, C = x.shape
    tgt = jnp.asarray(target).reshape(-1).astype(jnp.int32)

    cut_points = jnp.linspace(0.0, 1.0, num_bins + 1)[:-1]
    Wm = jnp.linspace(1.0, float(num_bins), num_bins).reshape(1, -1)
    bm = jnp.cumsum(-cut_points)

    conf = jnp.max(x, axis=1, keepdims=True)
    h = (conf @ Wm + bm) / t_b
    bp = jax.nn.softmax(h, axis=1)
    eps = 1e-6
    bp = (bp + eps) / (1.0 + (num_bins + 1) * eps)
    sbp = jnp.sum(bp, axis=0)
    bin_confs = (bp.T @ conf).reshape(-1) / sbp

    diffs = x[:, None, :] - x[:, :, None]             # [m, i, j] = x[m, j] - x[m, i]
    ranks = jnp.sum(jax.nn.sigmoid(t_a * diffs), axis=2) + 0.5
    true_ranks = ranks[jnp.arange(M), tgt]
    accs = jnp.maximum(2.0 - true_ranks, 0.0)
    bin_accs = (bp.T @ accs).reshape(-1) / sbp
    return jnp.sum(sbp * jnp.abs(bin_accs - bin_confs)) / M


if __name__ == "__main__":
    key = jax.random.PRNGKey(0)
    k1, k2 = jax.random.split(key)

    N, C, H, Wd = 2, 4, 16, 16                        # M = N*H*W = 512 samples
    logits = jax.random.normal(k1, (N, C, H, Wd), dtype=jnp.float32)
    probs = jax.nn.softmax(logits, axis=1)            # NCHW probabilities
    target = jax.random.randint(k2, (N, H, Wd), 0, C)  # NHW labels

    # tm=128 here only so the toy 512-sample problem exercises the multi-tile
    # accumulation and dual-shard paths; the production default is tm=512.
    ece = dece_forward(probs, target, num_bins=15, t_a=100.0, t_b=0.01,
                       tm=128, num_shards=2)
    ece = jax.block_until_ready(ece)
    ref = dece_reference(probs, target, num_bins=15, t_a=100.0, t_b=0.01)

    assert ece.shape == () and bool(jnp.isfinite(ece))
    assert abs(float(ece) - float(ref)) <= 5e-4 + 5e-3 * abs(float(ref)), (ece, ref)
    print("KERNEL_OK")
</pallas_src>

<mosaic_0001>
module attributes {stable_mosaic.version = 11 : i64} {
  func.func @_dece_kernel(%arg0: i32, %arg1: i32, %arg2: memref<128x4xf32, #tpu.memory_space<vmem>>, %arg3: memref<128x1xf32, #tpu.memory_space<vmem>>, %arg4: memref<1x15xf32, #tpu.memory_space<vmem>>, %arg5: memref<1x15xf32, #tpu.memory_space<vmem>>, %arg6: memref<1x3x15xf32, #tpu.memory_space<vmem>>) attributes {dimension_semantics = [#tpu.dimension_semantics<parallel>, #tpu.dimension_semantics<arbitrary>], iteration_bounds = array<i64: 2, 2>, scalar_prefetch = 0 : i64, scratch_operands = 0 : i64, tpu.core_type = #tpu.core_type<tc>, window_params = [{transform_indices = @transform_0, window_bounds = array<i64: 128, 4>}, {transform_indices = @transform_1, window_bounds = array<i64: 128, 1>}, {pipeline_mode = #tpu.pipeline_mode<synchronous>, transform_indices = @transform_2, window_bounds = array<i64: 1, 15>}, {pipeline_mode = #tpu.pipeline_mode<synchronous>, transform_indices = @transform_3, window_bounds = array<i64: 1, 15>}, {transform_indices = @transform_4, window_bounds = array<i64: 1, 3, 15>}]} {
    %c0_i32 = arith.constant 0 : i32
    %0 = arith.cmpi eq, %arg1, %c0_i32 : i32
    %1 = arith.extui %0 : i1 to i32
    %c0_i32_0 = arith.constant 0 : i32
    %2 = arith.cmpi ne, %1, %c0_i32_0 : i32
    scf.if %2 {
      %cst_29 = arith.constant 0.000000e+00 : f32
      %61 = vector.broadcast %cst_29 : f32 to vector<1x3x15xf32>
      %c0_30 = arith.constant 0 : index
      %c0_31 = arith.constant 0 : index
      %c0_32 = arith.constant 0 : index
      %62 = vector.load %arg6[%c0_30, %c0_31, %c0_32] : memref<1x3x15xf32, #tpu.memory_space<vmem>>, vector<1x3x15xf32>
      tpu.vector_store %arg6[%c0_30, %c0_31, %c0_32], %61 {strides = array<i32>} : memref<1x3x15xf32, #tpu.memory_space<vmem>>, vector<1x3x15xf32>,
    } else {
    }
    %c0 = arith.constant 0 : index
    %c0_1 = arith.constant 0 : index
    %3 = vector.load %arg2[%c0, %c0_1] : memref<128x4xf32, #tpu.memory_space<vmem>>, vector<128x4xf32>
    %c0_2 = arith.constant 0 : index
    %c0_3 = arith.constant 0 : index
    %4 = vector.load %arg3[%c0_2, %c0_3] : memref<128x1xf32, #tpu.memory_space<vmem>>, vector<128x1xf32>
    %cst = arith.constant dense<0xFF800000> : vector<128xf32>
    %5 = vector.multi_reduction <maximumf>, %3, %cst [1] : vector<128x4xf32> to vector<128xf32>
    %6 = vector.shape_cast %5 : vector<128xf32> to vector<128x1xf32>
    %7 = vector.broadcast %4 : vector<128x1xf32> to vector<128x4xf32>
    %8 = arith.subf %3, %7 : vector<128x4xf32>
    %cst_4 = arith.constant 5.000000e+01 : f32
    %9 = vector.broadcast %cst_4 : f32 to vector<128x4xf32>
    %10 = arith.mulf %9, %8 : vector<128x4xf32>
    %11 = math.tanh %10 : vector<128x4xf32>
    %cst_5 = arith.constant 1.000000e+00 : f32
    %12 = vector.broadcast %cst_5 : f32 to vector<128x4xf32>
    %13 = arith.addf %11, %12 : vector<128x4xf32>
    %cst_6 = arith.constant 5.000000e-01 : f32
    %14 = vector.broadcast %cst_6 : f32 to vector<128x4xf32>
    %15 = arith.mulf %14, %13 : vector<128x4xf32>
    %cst_7 = arith.constant dense<0.000000e+00> : vector<128xf32>
    %16 = vector.multi_reduction <add>, %15, %cst_7 [1] : vector<128x4xf32> to vector<128xf32>
    %17 = vector.shape_cast %16 : vector<128xf32> to vector<128x1xf32>
    %cst_8 = arith.constant 5.000000e-01 : f32
    %18 = vector.broadcast %cst_8 : f32 to vector<128x1xf32>
    %19 = arith.addf %17, %18 : vector<128x1xf32>
    %cst_9 = arith.constant 2.000000e+00 : f32
    %20 = vector.broadcast %cst_9 : f32 to vector<128x1xf32>
    %21 = arith.subf %20, %19 : vector<128x1xf32>
    %cst_10 = arith.constant 0.000000e+00 : f32
    %22 = vector.broadcast %cst_10 : f32 to vector<128x1xf32>
    %23 = arith.maximumf %21, %22 : vector<128x1xf32>
    %c0_11 = arith.constant 0 : index
    %c0_12 = arith.constant 0 : index
    %24 = vector.load %arg4[%c0_11, %c0_12] : memref<1x15xf32, #tpu.memory_space<vmem>>, vector<1x15xf32>
    %25 = vector.broadcast %6 : vector<128x1xf32> to vector<128x15xf32>
    %26 = vector.broadcast %24 : vector<1x15xf32> to vector<128x15xf32>
    %27 = arith.mulf %25, %26 : vector<128x15xf32>
    %c0_13 = arith.constant 0 : index
    %c0_14 = arith.constant 0 : index
    %28 = vector.load %arg5[%c0_13, %c0_14] : memref<1x15xf32, #tpu.memory_space<vmem>>, vector<1x15xf32>
    %29 = vector.broadcast %28 : vector<1x15xf32> to vector<128x15xf32>
    %30 = arith.addf %27, %29 : vector<128x15xf32>
    %cst_15 = arith.constant dense<0xFF800000> : vector<128xf32>
    %31 = vector.multi_reduction <maximumf>, %30, %cst_15 [1] : vector<128x15xf32> to vector<128xf32>
    %cst_16 = arith.constant 0xFF800000 : f32
    %32 = vector.broadcast %cst_16 : f32 to vector<128xf32>
    %33 = arith.maximumf %32, %31 : vector<128xf32>
    %34 = vector.shape_cast %33 : vector<128xf32> to vector<128x1xf32>
    %35 = vector.broadcast %34 : vector<128x1xf32> to vector<128x15xf32>
    %36 = arith.subf %30, %35 : vector<128x15xf32>
    %37 = math.exp %36 : vector<128x15xf32>
    %cst_17 = arith.constant dense<0.000000e+00> : vector<128xf32>
    %38 = vector.multi_reduction <add>, %37, %cst_17 [1] : vector<128x15xf32> to vector<128xf32>
    %39 = vector.shape_cast %38 : vector<128xf32> to vector<128x1xf32>
    %40 = vector.broadcast %39 : vector<128x1xf32> to vector<128x15xf32>
    %41 = arith.divf %37, %40 : vector<128x15xf32>
    %cst_18 = arith.constant 9.99999997E-7 : f32
    %42 = vector.broadcast %cst_18 : f32 to vector<128x15xf32>
    %43 = arith.addf %41, %42 : vector<128x15xf32>
    %cst_19 = arith.constant 9.999840e-01 : f32
    %44 = vector.broadcast %cst_19 : f32 to vector<128x15xf32>
    %45 = arith.mulf %43, %44 : vector<128x15xf32>
    %cst_20 = arith.constant dense<0.000000e+00> : vector<15xf32>
    %46 = vector.multi_reduction <add>, %45, %cst_20 [0] : vector<128x15xf32> to vector<15xf32>
    %47 = vector.shape_cast %46 : vector<15xf32> to vector<1x15xf32>
    %48 = vector.broadcast %6 : vector<128x1xf32> to vector<128x15xf32>
    %49 = arith.mulf %45, %48 : vector<128x15xf32>
    %cst_21 = arith.constant dense<0.000000e+00> : vector<15xf32>
    %50 = vector.multi_reduction <add>, %49, %cst_21 [0] : vector<128x15xf32> to vector<15xf32>
    %51 = vector.shape_cast %50 : vector<15xf32> to vector<1x15xf32>
    %52 = vector.broadcast %23 : vector<128x1xf32> to vector<128x15xf32>
    %53 = arith.mulf %45, %52 : vector<128x15xf32>
    %cst_22 = arith.constant dense<0.000000e+00> : vector<15xf32>
    %54 = vector.multi_reduction <add>, %53, %cst_22 [0] : vector<128x15xf32> to vector<15xf32>
    %55 = vector.shape_cast %54 : vector<15xf32> to vector<1x15xf32>
    %56 = tpu.concatenate %47, %51, %55 in 0 : vector<1x15xf32>, vector<1x15xf32>, vector<1x15xf32> -> vector<3x15xf32>
    %c0_23 = arith.constant 0 : index
    %c0_24 = arith.constant 0 : index
    %c0_25 = arith.constant 0 : index
    %57 = vector.load %arg6[%c0_23, %c0_24, %c0_25] : memref<1x3x15xf32, #tpu.memory_space<vmem>>, vector<1x3x15xf32>
    %58 = vector.shape_cast %56 : vector<3x15xf32> to vector<1x3x15xf32>
    %59 = arith.addf %57, %58 : vector<1x3x15xf32>
    %c0_26 = arith.constant 0 : index
    %c0_27 = arith.constant 0 : index
    %c0_28 = arith.constant 0 : index
    %60 = vector.load %arg6[%c0_26, %c0_27, %c0_28] : memref<1x3x15xf32, #tpu.memory_space<vmem>>, vector<1x3x15xf32>
    tpu.vector_store %arg6[%c0_26, %c0_27, %c0_28], %59 {strides = array<i32>} : memref<1x3x15xf32, #tpu.memory_space<vmem>>, vector<1x3x15xf32>,
    return
  }
  func.func @transform_0(%arg0: i32, %arg1: i32) -> (i32, i32) {
    %c2_i32 = arith.constant 2 : i32
    %0 = arith.muli %arg0, %c2_i32 : i32
    %1 = arith.addi %0, %arg1 : i32
    %c0_i32 = arith.constant 0 : i32
    %c0_i32_0 = arith.constant 0 : i32
    return %1, %c0_i32 : i32, i32
  }
  func.func @transform_1(%arg0: i32, %arg1: i32) -> (i32, i32) {
    %c2_i32 = arith.constant 2 : i32
    %0 = arith.muli %arg0, %c2_i32 : i32
    %1 = arith.addi %0, %arg1 : i32
    %c0_i32 = arith.constant 0 : i32
    %c0_i32_0 = arith.constant 0 : i32
    return %1, %c0_i32 : i32, i32
  }
  func.func @transform_2(%arg0: i32, %arg1: i32) -> (i32, i32) {
    %c0_i32 = arith.constant 0 : i32
    %c0_i32_0 = arith.constant 0 : i32
    %c0_i32_1 = arith.constant 0 : i32
    return %c0_i32, %c0_i32_0 : i32, i32
  }
  func.func @transform_3(%arg0: i32, %arg1: i32) -> (i32, i32) {
    %c0_i32 = arith.constant 0 : i32
    %c0_i32_0 = arith.constant 0 : i32
    %c0_i32_1 = arith.constant 0 : i32
    return %c0_i32, %c0_i32_0 : i32, i32
  }
  func.func @transform_4(%arg0: i32, %arg1: i32) -> (i32, i32, i32) {
    %c0_i32 = arith.constant 0 : i32
    %c0_i32_0 = arith.constant 0 : i32
    %c0_i32_1 = arith.constant 0 : i32
    return %arg0, %c0_i32, %c0_i32_0 : i32, i32, i32
  }
}

</mosaic_0001>

<llo_original>
// kernel: tpu_custom_call.1
$region0: #{tpu_custom_call.1}
  #allocation0 [shape = 'u32[]', space=smem, size = 0x4, offset = 0x4, fixed_abs, tag = 'smem constant byte address 0x4 - core index']
  #allocation1 [shape = 'u32[144,128]{1,0:T(1,128)}', space=vmem, size = 0x12000, scoped, tag = 'internal scratch']
  %s0 = inlined_call_operand.vmem [shape: f32[512,4], index: 0, kind: input, shape index: {}]
  %s1 = inlined_call_operand.vmem [shape: f32[512,1], index: 1, kind: input, shape index: {}]
  %s2 = inlined_call_operand.vmem [shape: f32[1,15], index: 2, kind: input, shape index: {}]
  %s3 = inlined_call_operand.vmem [shape: f32[1,15], index: 3, kind: input, shape index: {}]
  %s4 = inlined_call_operand.vmem [shape: f32[2,3,15], index: 4, kind: output, shape index: {}]
  %s5 = sld [smem:[#allocation0]]
  $region53: #{tpu_custom_call.1} parent=0
    _
  %s7 = ssub.s32 1, %s5
  %s8 = scalar_select 0, %s7, %s5
  loop: start=0, step=1, limit=6
  $region2: #{tpu_custom_call.1} parent=0 // loop_pre_header
    _
  $region3: #{tpu_custom_call.1} parent=0 // loop_header
    %s10 = sphi 0, %s14
    %p11 = scmp.ge.s32.totalorder %s10, 6
    %s17 = sphi 0, %s29
    %s18 = sphi 0, %s25
    %s19 = sphi 0, %s17
    %s20 = sphi 0, %s18
    %s21 = sphi 0, %s19
    %s22 = sphi 0, %s20
    %s36 = sphi 0, %s38
    %s39 = sphi 0, %s36
    %s40 = sphi 0, %s39
    %s56 = sphi 0, %s40
    %s66 = sphi 0, %s68
    %s69 = sphi 0, %s66
    %s70 = sphi 0, %s69
    %s86 = sphi 0, %s70
    %s90 = sphi 0, %s90
    %s92 = sphi 0, %s90
    %s93 = sphi 0, %s92
    %s107 = sphi 0, %s93
    %s111 = sphi 0, %s111
    %s113 = sphi 0, %s111
    %s114 = sphi 0, %s113
    %s128 = sphi 0, %s114
    %s134 = sphi 0, %s136
    %s137 = sphi 0, %s134
    %s138 = sphi 0, %s137
    %s154 = sphi 0, %s138
  $region4: #{tpu_custom_call.1} parent=0 // loop_header_branch
    %13 = sbr.rel (%p11) target = $region8
  $region5: #{tpu_custom_call.1} parent=0 // loop_body
    %s15 = ssub.s32 %s10, 1
    %s16 = ssub.s32 %s10, 2
    %s23 = sadd.s32 1, %s18
    %p24 = scmp.ge.s32.totalorder %s23, 2
    %s25 = scalar_select %p24, 0, %s23
    %s26 = sadd.s32 1, %s17
    %s27 = scalar_select %p24, %s26, %s17
    %p28 = scmp.ge.s32.totalorder %s27, 2
    %s29 = scalar_select %p28, 0, %s27
    %s30 = smul.u32 %s17, 2
    %s31 = sadd.s32 %s30, %s18
    %s32 = smul.u32 %s29, 2
    %s33 = sadd.s32 %s32, %s25
    %s34 = ssub.s32 %s31, %s33
    %p35 = scmp.eq.s32.totalorder %s34, 0
    %s37 = sadd.s32 %s36, 1
    %s38 = scalar_select %p35, %s36, %s37
    %p41 = pneg %p35
    %p42 = scmp.eq.s32.totalorder %s10, 3
    %p43 = por %p41, %p42
    %p44 = scmp.ne.s32.totalorder %s36, %s39
    %p45 = scmp.eq.s32.totalorder %s10, 0
    %p46 = por %p44, %p45
    %p47 = scmp.ne.s32.totalorder %s36, %s39
    %p48 = scmp.eq.s32.totalorder %s15, 3
    %p49 = por %p47, %p48
    %p50 = scmp.ne.s32.totalorder %s39, %s40
    %p51 = scmp.eq.s32.totalorder %s15, 0
    %p52 = por %p50, %p51
    %p53 = scmp.ne.s32.totalorder %s39, %s40
    %p54 = scmp.eq.s32.totalorder %s16, 3
    %p55 = por %p53, %p54
    %p57 = scmp.ne.s32.totalorder %s40, %s56
    %p58 = scmp.eq.s32.totalorder %s16, 0
    %p59 = por %p57, %p58
    %s60 = smul.u32 %s17, 2
    %s61 = sadd.s32 %s60, %s18
    %s62 = smul.u32 %s29, 2
    %s63 = sadd.s32 %s62, %s25
    %s64 = ssub.s32 %s61, %s63
    %p65 = scmp.eq.s32.totalorder %s64, 0
    %s67 = sadd.s32 %s66, 1
    %s68 = scalar_select %p65, %s66, %s67
    %p71 = pneg %p65
    %p72 = scmp.eq.s32.totalorder %s10, 3
    %p73 = por %p71, %p72
    %p74 = scmp.ne.s32.totalorder %s66, %s69
    %p75 = scmp.eq.s32.totalorder %s10, 0
    %p76 = por %p74, %p75
    %p77 = scmp.ne.s32.totalorder %s66, %s69
    %p78 = scmp.eq.s32.totalorder %s15, 3
    %p79 = por %p77, %p78
    %p80 = scmp.ne.s32.totalorder %s69, %s70
    %p81 = scmp.eq.s32.totalorder %s15, 0
    %p82 = por %p80, %p81
    %p83 = scmp.ne.s32.totalorder %s69, %s70
    %p84 = scmp.eq.s32.totalorder %s16, 3
    %p85 = por %p83, %p84
    %p87 = scmp.ne.s32.totalorder %s70, %s86
    %p88 = scmp.eq.s32.totalorder %s16, 0
    %p89 = por %p87, %p88
    %s91 = sadd.s32 %s90, 1
    %p94 = scmp.eq.s32.totalorder %s10, 3
    %p95 = scmp.ne.s32.totalorder %s90, %s92
    %p96 = scmp.eq.s32.totalorder %s10, 0
    %p97 = por %p95, %p96
    %p98 = scmp.ne.s32.totalorder %s90, %s92
    %p99 = scmp.eq.s32.totalorder %s15, 3
    %p100 = por %p98, %p99
    %p101 = scmp.ne.s32.totalorder %s92, %s93
    %p102 = scmp.eq.s32.totalorder %s15, 0
    %p103 = por %p101, %p102
    %p104 = scmp.ne.s32.totalorder %s92, %s93
    %p105 = scmp.eq.s32.totalorder %s16, 3
    %p106 = por %p104, %p105
    %p108 = scmp.ne.s32.totalorder %s93, %s107
    %p109 = scmp.eq.s32.totalorder %s16, 0
    %p110 = por %p108, %p109
    %s112 = sadd.s32 %s111, 1
    %p115 = scmp.eq.s32.totalorder %s10, 3
    %p116 = scmp.ne.s32.totalorder %s111, %s113
    %p117 = scmp.eq.s32.totalorder %s10, 0
    %p118 = por %p116, %p117
    %p119 = scmp.ne.s32.totalorder %s111, %s113
    %p120 = scmp.eq.s32.totalorder %s15, 3
    %p121 = por %p119, %p120
    %p122 = scmp.ne.s32.totalorder %s113, %s114
    %p123 = scmp.eq.s32.totalorder %s15, 0
    %p124 = por %p122, %p123
    %p125 = scmp.ne.s32.totalorder %s113, %s114
    %p126 = scmp.eq.s32.totalorder %s16, 3
    %p127 = por %p125, %p126
    %p129 = scmp.ne.s32.totalorder %s114, %s128
    %p130 = scmp.eq.s32.totalorder %s16, 0
    %p131 = por %p129, %p130
    %s132 = ssub.s32 %s17, %s29
    %p133 = scmp.eq.s32.totalorder %s132, 0
    %s135 = sadd.s32 %s134, 1
    %s136 = scalar_select %p133, %s134, %s135
    %p139 = pneg %p133
    %p140 = scmp.eq.s32.totalorder %s10, 3
    %p141 = por %p139, %p140
    %p142 = scmp.ne.s32.totalorder %s134, %s137
    %p143 = scmp.eq.s32.totalorder %s10, 0
    %p144 = por %p142, %p143
    %p145 = scmp.ne.s32.totalorder %s134, %s137
    %p146 = scmp.eq.s32.totalorder %s15, 3
    %p147 = por %p145, %p146
    %p148 = scmp.ne.s32.totalorder %s137, %s138
    %p149 = scmp.eq.s32.totalorder %s15, 0
    %p150 = por %p148, %p149
    %p151 = scmp.ne.s32.totalorder %s137, %s138
    %p152 = scmp.eq.s32.totalorder %s16, 3
    %p153 = por %p151, %p152
    %p155 = scmp.ne.s32.totalorder %s138, %s154
    %p156 = scmp.eq.s32.totalorder %s16, 0
    %p157 = por %p155, %p156
    %p158 = scmp.le.s32.totalorder 1, %s10
    %p159 = scmp.lt.s32.totalorder %s10, 5
    %p160 = pnand %p158, %p159
    %p161 = pneg %p160
    // Predicated region
    $region9: #{tpu_custom_call.1} parent=5 // pred_check
      _
    $region10: #{tpu_custom_call.1} parent=5 // pred_check_branch
      %163 = sbr.rel (%p160) target = $region12
    $region11: #{tpu_custom_call.1} parent=5 // pred_region
      %s164 = ssub.s32 %s10, 1
      // Predicated region
      $region13: #{tpu_custom_call.1} parent=11 // pred_check
        %p165 = pneg %p103
      $region14: #{tpu_custom_call.1} parent=11 // pred_check_branch
        %167 = sbr.rel (%p165) target = $region16
      $region15: #{tpu_custom_call.1} parent=11 // pred_region
        _
      $region16: #{tpu_custom_call.1} parent=11 // pred_fallthru
        _
      // Predicated region
      $region17: #{tpu_custom_call.1} parent=11 // pred_check
        %p168 = pneg %p124
      $region18: #{tpu_custom_call.1} parent=11 // pred_check_branch
        %170 = sbr.rel (%p168) target = $region20
      $region19: #{tpu_custom_call.1} parent=11 // pred_region
        _
      $region20: #{tpu_custom_call.1} parent=11 // pred_fallthru
        _
    $region12: #{tpu_custom_call.1} parent=5 // pred_fallthru
      _
    %p171 = scmp.lt.s32.totalorder %s10, 4
    // Predicated region
    $region21: #{tpu_custom_call.1} parent=5 // pred_check
      %p172 = pneg %p171
    $region22: #{tpu_custom_call.1} parent=5 // pred_check_branch
      %174 = sbr.rel (%p172) target = $region24
    $region23: #{tpu_custom_call.1} parent=5 // pred_region
      // Predicated region
      $region25: #{tpu_custom_call.1} parent=23 // pred_check
        %p175 = pneg %p46
      $region26: #{tpu_custom_call.1} parent=23 // pred_check_branch
        %177 = sbr.rel (%p175) target = $region28
      $region27: #{tpu_custom_call.1} parent=23 // pred_region
        %s178 = smul.u32 %s17, 2
        %s179 = sadd.s32 %s178, %s18
        %s180 = smul.u32 16, %s179
        %p181 = scmp.lt.s32.totalorder %s180, 63
        %s182 = scalar_select %p181, %s180, 63
        %s183 = smul.addr %s182, 8
        %s184 = scalar_lea.vmem %s0, %s183
        %s185 = smul.u32 %s17, 2
        %s186 = sadd.s32 %s185, %s18
        %s187 = smul.u32 16, %s186
      $region28: #{tpu_custom_call.1} parent=23 // pred_fallthru
        _
      // Predicated region
      $region29: #{tpu_custom_call.1} parent=23 // pred_check
        %p188 = pneg %p76
      $region30: #{tpu_custom_call.1} parent=23 // pred_check_branch
        %190 = sbr.rel (%p188) target = $region32
      $region31: #{tpu_custom_call.1} parent=23 // pred_region
        %s191 = smul.u32 %s17, 2
        %s192 = sadd.s32 %s191, %s18
        %s193 = smul.u32 16, %s192
        %p194 = scmp.lt.s32.totalorder %s193, 63
        %s195 = scalar_select %p194, %s193, 63
        %s196 = smul.addr %s195, 8
        %s197 = scalar_lea.vmem %s1, %s196
        %s198 = smul.u32 %s17, 2
        %s199 = sadd.s32 %s198, %s18
        %s200 = smul.u32 16, %s199
      $region32: #{tpu_custom_call.1} parent=23 // pred_fallthru
        _
    $region24: #{tpu_custom_call.1} parent=5 // pred_fallthru
      _
    %p201 = scmp.le.s32.totalorder 1, %s10
    %p202 = scmp.lt.s32.totalorder %s10, 5
    %p203 = pnand %p201, %p202
    %p204 = pneg %p203
    // Predicated region
    $region33: #{tpu_custom_call.1} parent=5 // pred_check
      _
    $region34: #{tpu_custom_call.1} parent=5 // pred_check_branch
      %206 = sbr.rel (%p203) target = $region36
    $region35: #{tpu_custom_call.1} parent=5 // pred_region
      %s207 = ssub.s32 %s10, 1
      %s208 = smul.u32 %s19, 2
      %s209 = sadd.s32 %s208, %s20
      %s210 = smul.u32 16, %s209
      %p211 = scmp.lt.s32.totalorder %s210, 63
      %s212 = scalar_select %p211, %s210, 63
      %s213 = smul.addr %s212, 8
      %s214 = scalar_lea.vmem %s0, %s213
      %p215 = pneg %p52
      %p216 = pneg %p49
      %s217 = smul.u32 %s19, 2
      %s218 = sadd.s32 %s217, %s20
      %s219 = smul.u32 16, %s218
      %p220 = scmp.lt.s32.totalorder %s219, 63
      %s221 = scalar_select %p220, %s219, 63
      %s222 = smul.addr %s221, 8
      %s223 = scalar_lea.vmem %s1, %s222
      %p224 = pneg %p82
      %p225 = pneg %p79
      %p226 = pneg %p103
      %p227 = pneg %p100
      %p228 = pneg %p124
      %p229 = pneg %p121
      %p230 = pneg %p150
      %p231 = pneg %p147
      %p232 = scmp.lt.s32.totalorder %s19, 1
      %s233 = scalar_select %p232, %s19, 1
      %s234 = smul.addr %s233, 4
      %s235 = scalar_lea.vmem %s4, %s234
      %s236 = smul.u32 %s19, 2
      %s237 = sadd.s32 %s236, %s20
      %s238 = smul.u32 16, %s237
      %p239 = scmp.lt.s32.totalorder %s238, 63
      %s240 = scalar_select %p239, %s238, 63
      %s241 = smul.addr %s240, 8
      %s242 = scalar_lea.vmem %s0, %s241
      %s243 = smul.u32 %s19, 2
      %s244 = sadd.s32 %s243, %s20
      %s245 = smul.u32 16, %s244
      %s246 = smul.u32 %s19, 2
      %s247 = sadd.s32 %s246, %s20
      %s248 = smul.u32 16, %s247
      %p249 = scmp.lt.s32.totalorder %s248, 63
      %s250 = scalar_select %p249, %s248, 63
      %s251 = smul.addr %s250, 8
      %s252 = scalar_lea.vmem %s1, %s251
      %s253 = smul.u32 %s19, 2
      %s254 = sadd.s32 %s253, %s20
      %s255 = smul.u32 16, %s254
      %p256 = scmp.lt.s32.totalorder %s19, 1
      %s257 = scalar_select %p256, %s19, 1
      %s258 = smul.addr %s257, 4
      %s259 = scalar_lea.vmem %s4, %s258
      %p260 = scmp.eq.s32.totalorder %s20, 0
      // Predicated region
      $region37: #{tpu_custom_call.1} parent=35 // pred_check
        %p261 = pneg %p260
      $region38: #{tpu_custom_call.1} parent=35 // pred_check_branch
        %263 = sbr.rel (%p261) target = $region40
      $region39: #{tpu_custom_call.1} parent=35 // pred_region
        %vm264 = vcmask 116736
        %265 = vst.msk [vmem:[%s259] sm:$0x7] %vm264, 0.0
      $region40: #{tpu_custom_call.1} parent=35 // pred_fallthru
        _
      %v266 = vld [vmem:[%s242] sm:$0xff]
      %v267 = vld [vmem:[%s242 + $0x8] sm:$0xff]
      %v268 = vld [vmem:[%s242 + $0x10] sm:$0xff]
      %v269 = vld [vmem:[%s242 + $0x18] sm:$0xff]
      %v270 = vld [vmem:[%s242 + $0x20] sm:$0xff]
      %v271 = vld [vmem:[%s242 + $0x28] sm:$0xff]
      %v272 = vld [vmem:[%s242 + $0x30] sm:$0xff]
      %v273 = vld [vmem:[%s242 + $0x38] sm:$0xff]
      %v274 = vld [vmem:[%s242 + $0x40] sm:$0xff]
      %v275 = vld [vmem:[%s242 + $0x48] sm:$0xff]
      %v276 = vld [vmem:[%s242 + $0x50] sm:$0xff]
      %v277 = vld [vmem:[%s242 + $0x58] sm:$0xff]
      %v278 = vld [vmem:[%s242 + $0x60] sm:$0xff]
      %v279 = vld [vmem:[%s242 + $0x68] sm:$0xff]
      %v280 = vld [vmem:[%s242 + $0x70] sm:$0xff]
      %v281 = vld [vmem:[%s242 + $0x78] sm:$0xff]
      %v282 = vld [vmem:[%s252] sm:$0xff]
      %v283 = vld [vmem:[%s252 + $0x8] sm:$0xff]
      %v284 = vld [vmem:[%s252 + $0x10] sm:$0xff]
      %v285 = vld [vmem:[%s252 + $0x18] sm:$0xff]
      %v286 = vld [vmem:[%s252 + $0x20] sm:$0xff]
      %v287 = vld [vmem:[%s252 + $0x28] sm:$0xff]
      %v288 = vld [vmem:[%s252 + $0x30] sm:$0xff]
      %v289 = vld [vmem:[%s252 + $0x38] sm:$0xff]
      %v290 = vld [vmem:[%s252 + $0x40] sm:$0xff]
      %v291 = vld [vmem:[%s252 + $0x48] sm:$0xff]
      %v292 = vld [vmem:[%s252 + $0x50] sm:$0xff]
      %v293 = vld [vmem:[%s252 + $0x58] sm:$0xff]
      %v294 = vld [vmem:[%s252 + $0x60] sm:$0xff]
      %v295 = vld [vmem:[%s252 + $0x68] sm:$0xff]
      %v296 = vld [vmem:[%s252 + $0x70] sm:$0xff]
      %v297 = vld [vmem:[%s252 + $0x78] sm:$0xff]
      %vm298 = vcmask 31744
      %v299 = vsel %vm298, %v266, -inf
      %300 = vmax.xlane.f32.xlu0 %v299
      %v301 = vpop.xlane.xlu0 %300
      %v302 = vsel %vm298, %v267, -inf
      %303 = vmax.xlane.f32.xlu0 %v302
      %v304 = vpop.xlane.xlu0 %303
      %v305 = vsel %vm298, %v268, -inf
      %306 = vmax.xlane.f32.xlu0 %v305
      %v307 = vpop.xlane.xlu0 %306
      %v308 = vsel %vm298, %v269, -inf
      %309 = vmax.xlane.f32.xlu0 %v308
      %v310 = vpop.xlane.xlu0 %309
      %v311 = vsel %vm298, %v270, -inf
      %312 = vmax.xlane.f32.xlu0 %v311
      %v313 = vpop.xlane.xlu0 %312
      %v314 = vsel %vm298, %v271, -inf
      %315 = vmax.xlane.f32.xlu0 %v314
      %v316 = vpop.xlane.xlu0 %315
      %v317 = vsel %vm298, %v272, -inf
      %318 = vmax.xlane.f32.xlu0 %v317
      %v319 = vpop.xlane.xlu0 %318
      %v320 = vsel %vm298, %v273, -inf
      %321 = vmax.xlane.f32.xlu0 %v320
      %v322 = vpop.xlane.xlu0 %321
      %v323 = vsel %vm298, %v274, -inf
      %324 = vmax.xlane.f32.xlu0 %v323
      %v325 = vpop.xlane.xlu0 %324
      %v326 = vsel %vm298, %v275, -inf
      %327 = vmax.xlane.f32.xlu0 %v326
      %v328 = vpop.xlane.xlu0 %327
      %v329 = vsel %vm298, %v276, -inf
      %330 = vmax.xlane.f32.xlu0 %v329
      %v331 = vpop.xlane.xlu0 %330
      %v332 = vsel %vm298, %v277, -inf
      %333 = vmax.xlane.f32.xlu0 %v332
      %v334 = vpop.xlane.xlu0 %333
      %v335 = vsel %vm298, %v278, -inf
      %336 = vmax.xlane.f32.xlu0 %v335
      %v337 = vpop.xlane.xlu0 %336
      %v338 = vsel %vm298, %v279, -inf
      %339 = vmax.xlane.f32.xlu0 %v338
      %v340 = vpop.xlane.xlu0 %339
      %v341 = vsel %vm298, %v280, -inf
      %342 = vmax.xlane.f32.xlu0 %v341
      %v343 = vpop.xlane.xlu0 %342
      %v344 = vsel %vm298, %v281, -inf
      %345 = vmax.xlane.f32.xlu0 %v344
      %v346 = vpop.xlane.xlu0 %345
      %348 = vset.pattern.permute.xlu0 0
      %349 = vperm.xlu0 %348, %v282
      %v350 = vpop.permute.xlu0 %349
      %353 = vset.pattern.permute.xlu0 0
      %354 = vperm.xlu0 %353, %v283
      %v355 = vpop.permute.xlu0 %354
      %358 = vset.pattern.permute.xlu0 0
      %359 = vperm.xlu0 %358, %v284
      %v360 = vpop.permute.xlu0 %359
      %363 = vset.pattern.permute.xlu0 0
      %364 = vperm.xlu0 %363, %v285
      %v365 = vpop.permute.xlu0 %364
      %368 = vset.pattern.permute.xlu0 0
      %369 = vperm.xlu0 %368, %v286
      %v370 = vpop.permute.xlu0 %369
      %373 = vset.pattern.permute.xlu0 0
      %374 = vperm.xlu0 %373, %v287
      %v375 = vpop.permute.xlu0 %374
      %378 = vset.pattern.permute.xlu0 0
      %379 = vperm.xlu0 %378, %v288
      %v380 = vpop.permute.xlu0 %379
      %383 = vset.pattern.permute.xlu0 0
      %384 = vperm.xlu0 %383, %v289
      %v385 = vpop.permute.xlu0 %384
      %388 = vset.pattern.permute.xlu0 0
      %389 = vperm.xlu0 %388, %v290
      %v390 = vpop.permute.xlu0 %389
      %393 = vset.pattern.permute.xlu0 0
      %394 = vperm.xlu0 %393, %v291
      %v395 = vpop.permute.xlu0 %394
      %398 = vset.pattern.permute.xlu0 0
      %399 = vperm.xlu0 %398, %v292
      %v400 = vpop.permute.xlu0 %399
      %403 = vset.pattern.permute.xlu0 0
      %404 = vperm.xlu0 %403, %v293
      %v405 = vpop.permute.xlu0 %404
      %408 = vset.pattern.permute.xlu0 0
      %409 = vperm.xlu0 %408, %v294
      %v410 = vpop.permute.xlu0 %409
      %413 = vset.pattern.permute.xlu0 0
      %414 = vperm.xlu0 %413, %v295
      %v415 = vpop.permute.xlu0 %414
      %418 = vset.pattern.permute.xlu0 0
      %419 = vperm.xlu0 %418, %v296
      %v420 = vpop.permute.xlu0 %419
      %423 = vset.pattern.permute.xlu0 0
      %424 = vperm.xlu0 %423, %v297
      %v425 = vpop.permute.xlu0 %424
      %v427 = vsub.f32 %v266, %v350
      %v428 = vsub.f32 %v267, %v355
      %v429 = vsub.f32 %v268, %v360
      %v430 = vsub.f32 %v269, %v365
      %v431 = vsub.f32 %v270, %v370
      %v432 = vsub.f32 %v271, %v375
      %v433 = vsub.f32 %v272, %v380
      %v434 = vsub.f32 %v273, %v385
      %v435 = vsub.f32 %v274, %v390
      %v436 = vsub.f32 %v275, %v395
      %v437 = vsub.f32 %v276, %v400
      %v438 = vsub.f32 %v277, %v405
      %v439 = vsub.f32 %v278, %v410
      %v440 = vsub.f32 %v279, %v415
      %v441 = vsub.f32 %v280, %v420
      %v442 = vsub.f32 %v281, %v425
      %v443 = vmul.f32 %v427, 50.0
      %v444 = vmul.f32 %v428, 50.0
      %v445 = vmul.f32 %v429, 50.0
      %v446 = vmul.f32 %v430, 50.0
      %v447 = vmul.f32 %v431, 50.0
      %v448 = vmul.f32 %v432, 50.0
      %v449 = vmul.f32 %v433, 50.0
      %v450 = vmul.f32 %v434, 50.0
      %v451 = vmul.f32 %v435, 50.0
      %v452 = vmul.f32 %v436, 50.0
      %v453 = vmul.f32 %v437, 50.0
      %v454 = vmul.f32 %v438, 50.0
      %v455 = vmul.f32 %v439, 50.0
      %v456 = vmul.f32 %v440, 50.0
      %v457 = vmul.f32 %v441, 50.0
      %v458 = vmul.f32 %v442, 50.0
      %v459 = vtanh.pop %v443
      %v460 = vtanh.pop %v444
      %v461 = vtanh.pop %v445
      %v462 = vtanh.pop %v446
      %v463 = vtanh.pop %v447
      %v464 = vtanh.pop %v448
      %v465 = vtanh.pop %v449
      %v466 = vtanh.pop %v450
      %v467 = vtanh.pop %v451
      %v468 = vtanh.pop %v452
      %v469 = vtanh.pop %v453
      %v470 = vtanh.pop %v454
      %v471 = vtanh.pop %v455
      %v472 = vtanh.pop %v456
      %v473 = vtanh.pop %v457
      %v474 = vtanh.pop %v458
      %v475 = vadd.f32 %v459, 1.0
      %v476 = vadd.f32 %v460, 1.0
      %v477 = vadd.f32 %v461, 1.0
      %v478 = vadd.f32 %v462, 1.0
      %v479 = vadd.f32 %v463, 1.0
      %v480 = vadd.f32 %v464, 1.0
      %v481 = vadd.f32 %v465, 1.0
      %v482 = vadd.f32 %v466, 1.0
      %v483 = vadd.f32 %v467, 1.0
      %v484 = vadd.f32 %v468, 1.0
      %v485 = vadd.f32 %v469, 1.0
      %v486 = vadd.f32 %v470, 1.0
      %v487 = vadd.f32 %v471, 1.0
      %v488 = vadd.f32 %v472, 1.0
      %v489 = vadd.f32 %v473, 1.0
      %v490 = vadd.f32 %v474, 1.0
      %v491 = vmul.f32 %v475, 0.5
      %v492 = vmul.f32 %v476, 0.5
      %v493 = vmul.f32 %v477, 0.5
      %v494 = vmul.f32 %v478, 0.5
      %v495 = vmul.f32 %v479, 0.5
      %v496 = vmul.f32 %v480, 0.5
      %v497 = vmul.f32 %v481, 0.5
      %v498 = vmul.f32 %v482, 0.5
      %v499 = vmul.f32 %v483, 0.5
      %v500 = vmul.f32 %v484, 0.5
      %v501 = vmul.f32 %v485, 0.5
      %v502 = vmul.f32 %v486, 0.5
      %v503 = vmul.f32 %v487, 0.5
      %v504 = vmul.f32 %v488, 0.5
      %v505 = vmul.f32 %v489, 0.5
      %v506 = vmul.f32 %v490, 0.5
      %v507 = vsel %vm298, %v491, 0.0
      %508 = vadd.xlane.f32.xlu0 %v507
      %v509 = vpop.xlane.xlu0 %508
      %v510 = vsel %vm298, %v492, 0.0
      %511 = vadd.xlane.f32.xlu0 %v510
      %v512 = vpop.xlane.xlu0 %511
      %v513 = vsel %vm298, %v493, 0.0
      %514 = vadd.xlane.f32.xlu0 %v513
      %v515 = vpop.xlane.xlu0 %514
      %v516 = vsel %vm298, %v494, 0.0
      %517 = vadd.xlane.f32.xlu0 %v516
      %v518 = vpop.xlane.xlu0 %517
      %v519 = vsel %vm298, %v495, 0.0
      %520 = vadd.xlane.f32.xlu0 %v519
      %v521 = vpop.xlane.xlu0 %520
      %v522 = vsel %vm298, %v496, 0.0
      %523 = vadd.xlane.f32.xlu0 %v522
      %v524 = vpop.xlane.xlu0 %523
      %v525 = vsel %vm298, %v497, 0.0
      %526 = vadd.xlane.f32.xlu0 %v525
      %v527 = vpop.xlane.xlu0 %526
      %v528 = vsel %vm298, %v498, 0.0
      %529 = vadd.xlane.f32.xlu0 %v528
      %v530 = vpop.xlane.xlu0 %529
      %v531 = vsel %vm298, %v499, 0.0
      %532 = vadd.xlane.f32.xlu0 %v531
      %v533 = vpop.xlane.xlu0 %532
      %v534 = vsel %vm298, %v500, 0.0
      %535 = vadd.xlane.f32.xlu0 %v534
      %v536 = vpop.xlane.xlu0 %535
      %v537 = vsel %vm298, %v501, 0.0
      %538 = vadd.xlane.f32.xlu0 %v537
      %v539 = vpop.xlane.xlu0 %538
      %v540 = vsel %vm298, %v502, 0.0
      %541 = vadd.xlane.f32.xlu0 %v540
      %v542 = vpop.xlane.xlu0 %541
      %v543 = vsel %vm298, %v503, 0.0
      %544 = vadd.xlane.f32.xlu0 %v543
      %v545 = vpop.xlane.xlu0 %544
      %v546 = vsel %vm298, %v504, 0.0
      %547 = vadd.xlane.f32.xlu0 %v546
      %v548 = vpop.xlane.xlu0 %547
      %v549 = vsel %vm298, %v505, 0.0
      %550 = vadd.xlane.f32.xlu0 %v549
      %v551 = vpop.xlane.xlu0 %550
      %v552 = vsel %vm298, %v506, 0.0
      %553 = vadd.xlane.f32.xlu0 %v552
      %v554 = vpop.xlane.xlu0 %553
      %v555 = vadd.f32 %v509, 0.5
      %v556 = vadd.f32 %v512, 0.5
      %v557 = vadd.f32 %v515, 0.5
      %v558 = vadd.f32 %v518, 0.5
      %v559 = vadd.f32 %v521, 0.5
      %v560 = vadd.f32 %v524, 0.5
      %v561 = vadd.f32 %v527, 0.5
      %v562 = vadd.f32 %v530, 0.5
      %v563 = vadd.f32 %v533, 0.5
      %v564 = vadd.f32 %v536, 0.5
      %v565 = vadd.f32 %v539, 0.5
      %v566 = vadd.f32 %v542, 0.5
      %v567 = vadd.f32 %v545, 0.5
      %v568 = vadd.f32 %v548, 0.5
      %v569 = vadd.f32 %v551, 0.5
      %v570 = vadd.f32 %v554, 0.5
      %v571 = vsub.f32 2.0, %v555
      %v572 = vsub.f32 2.0, %v556
      %v573 = vsub.f32 2.0, %v557
      %v574 = vsub.f32 2.0, %v558
      %v575 = vsub.f32 2.0, %v559
      %v576 = vsub.f32 2.0, %v560
      %v577 = vsub.f32 2.0, %v561
      %v578 = vsub.f32 2.0, %v562
      %v579 = vsub.f32 2.0, %v563
      %v580 = vsub.f32 2.0, %v564
      %v581 = vsub.f32 2.0, %v565
      %v582 = vsub.f32 2.0, %v566
      %v583 = vsub.f32 2.0, %v567
      %v584 = vsub.f32 2.0, %v568
      %v585 = vsub.f32 2.0, %v569
      %v586 = vsub.f32 2.0, %v570
      %v587 = vmax.f32 %v571, 0.0
      %v588 = vmax.f32 %v572, 0.0
      %v589 = vmax.f32 %v573, 0.0
      %v590 = vmax.f32 %v574, 0.0
      %v591 = vmax.f32 %v575, 0.0
      %v592 = vmax.f32 %v576, 0.0
      %v593 = vmax.f32 %v577, 0.0
      %v594 = vmax.f32 %v578, 0.0
      %v595 = vmax.f32 %v579, 0.0
      %v596 = vmax.f32 %v580, 0.0
      %v597 = vmax.f32 %v581, 0.0
      %v598 = vmax.f32 %v582, 0.0
      %v599 = vmax.f32 %v583, 0.0
      %v600 = vmax.f32 %v584, 0.0
      %v601 = vmax.f32 %v585, 0.0
      %v602 = vmax.f32 %v586, 0.0
      %v603 = vld [vmem:[%s2] sm:$0x1]
      %v605 = vlaneseq
      %v606 = vshrl.u32 %v605, 7
      %v607 = vsub.s32 0, %v606
      %v608 = vrot.slane %v603, %v607
      %v610 = vmul.f32 %v301, %v608
      %v611 = vmul.f32 %v304, %v608
      %v612 = vmul.f32 %v307, %v608
      %v613 = vmul.f32 %v310, %v608
      %v614 = vmul.f32 %v313, %v608
      %v615 = vmul.f32 %v316, %v608
      %v616 = vmul.f32 %v319, %v608
      %v617 = vmul.f32 %v322, %v608
      %v618 = vmul.f32 %v325, %v608
      %v619 = vmul.f32 %v328, %v608
      %v620 = vmul.f32 %v331, %v608
      %v621 = vmul.f32 %v334, %v608
      %v622 = vmul.f32 %v337, %v608
      %v623 = vmul.f32 %v340, %v608
      %v624 = vmul.f32 %v343, %v608
      %v625 = vmul.f32 %v346, %v608
      %v626 = vld [vmem:[%s3] sm:$0x1]
      %v628 = vlaneseq
      %v629 = vshrl.u32 %v628, 7
      %v630 = vsub.s32 0, %v629
      %v631 = vrot.slane %v626, %v630
      %v633 = vadd.f32 %v610, %v631
      %v634 = vadd.f32 %v611, %v631
      %v635 = vadd.f32 %v612, %v631
      %v636 = vadd.f32 %v613, %v631
      %v637 = vadd.f32 %v614, %v631
      %v638 = vadd.f32 %v615, %v631
      %v639 = vadd.f32 %v616, %v631
      %v640 = vadd.f32 %v617, %v631
      %v641 = vadd.f32 %v618, %v631
      %v642 = vadd.f32 %v619, %v631
      %v643 = vadd.f32 %v620, %v631
      %v644 = vadd.f32 %v621, %v631
      %v645 = vadd.f32 %v622, %v631
      %v646 = vadd.f32 %v623, %v631
      %v647 = vadd.f32 %v624, %v631
      %v648 = vadd.f32 %v625, %v631
      %vm649 = vcmask 121856
      %v650 = vsel %vm649, %v633, -inf
      %651 = vmax.xlane.f32.xlu0 %v650
      %v652 = vpop.xlane.xlu0 %651
      %v653 = vsel %vm649, %v634, -inf
      %654 = vmax.xlane.f32.xlu0 %v653
      %v655 = vpop.xlane.xlu0 %654
      %v656 = vsel %vm649, %v635, -inf
      %657 = vmax.xlane.f32.xlu0 %v656
      %v658 = vpop.xlane.xlu0 %657
      %v659 = vsel %vm649, %v636, -inf
      %660 = vmax.xlane.f32.xlu0 %v659
      %v661 = vpop.xlane.xlu0 %660
      %v662 = vsel %vm649, %v637, -inf
      %663 = vmax.xlane.f32.xlu0 %v662
      %v664 = vpop.xlane.xlu0 %663
      %v665 = vsel %vm649, %v638, -inf
      %666 = vmax.xlane.f32.xlu0 %v665
      %v667 = vpop.xlane.xlu0 %666
      %v668 = vsel %vm649, %v639, -inf
      %669 = vmax.xlane.f32.xlu0 %v668
      %v670 = vpop.xlane.xlu0 %669
      %v671 = vsel %vm649, %v640, -inf
      %672 = vmax.xlane.f32.xlu0 %v671
      %v673 = vpop.xlane.xlu0 %672
      %v674 = vsel %vm649, %v641, -inf
      %675 = vmax.xlane.f32.xlu0 %v674
      %v676 = vpop.xlane.xlu0 %675
      %v677 = vsel %vm649, %v642, -inf
      %678 = vmax.xlane.f32.xlu0 %v677
      %v679 = vpop.xlane.xlu0 %678
      %v680 = vsel %vm649, %v643, -inf
      %681 = vmax.xlane.f32.xlu0 %v680
      %v682 = vpop.xlane.xlu0 %681
      %v683 = vsel %vm649, %v644, -inf
      %684 = vmax.xlane.f32.xlu0 %v683
      %v685 = vpop.xlane.xlu0 %684
      %v686 = vsel %vm649, %v645, -inf
      %687 = vmax.xlane.f32.xlu0 %v686
      %v688 = vpop.xlane.xlu0 %687
      %v689 = vsel %vm649, %v646, -inf
      %690 = vmax.xlane.f32.xlu0 %v689
      %v691 = vpop.xlane.xlu0 %690
      %v692 = vsel %vm649, %v647, -inf
      %693 = vmax.xlane.f32.xlu0 %v692
      %v694 = vpop.xlane.xlu0 %693
      %v695 = vsel %vm649, %v648, -inf
      %696 = vmax.xlane.f32.xlu0 %v695
      %v697 = vpop.xlane.xlu0 %696
      %v698 = vsub.f32 %v633, %v652
      %v699 = vsub.f32 %v634, %v655
      %v700 = vsub.f32 %v635, %v658
      %v701 = vsub.f32 %v636, %v661
      %v702 = vsub.f32 %v637, %v664
      %v703 = vsub.f32 %v638, %v667
      %v704 = vsub.f32 %v639, %v670
      %v705 = vsub.f32 %v640, %v673
      %v706 = vsub.f32 %v641, %v676
      %v707 = vsub.f32 %v642, %v679
      %v708 = vsub.f32 %v643, %v682
      %v709 = vsub.f32 %v644, %v685
      %v710 = vsub.f32 %v645, %v688
      %v711 = vsub.f32 %v646, %v691
      %v712 = vsub.f32 %v647, %v694
      %v713 = vsub.f32 %v648, %v697
      %v714 = vmul.f32 %v698, 1.442695
      %v715 = vpow.pop %v714
      %v716 = vmul.f32 %v699, 1.442695
      %v717 = vpow.pop %v716
      %v718 = vmul.f32 %v700, 1.442695
      %v719 = vpow.pop %v718
      %v720 = vmul.f32 %v701, 1.442695
      %v721 = vpow.pop %v720
      %v722 = vmul.f32 %v702, 1.442695
      %v723 = vpow.pop %v722
      %v724 = vmul.f32 %v703, 1.442695
      %v725 = vpow.pop %v724
      %v726 = vmul.f32 %v704, 1.442695
      %v727 = vpow.pop %v726
      %v728 = vmul.f32 %v705, 1.442695
      %v729 = vpow.pop %v728
      %v730 = vmul.f32 %v706, 1.442695
      %v731 = vpow.pop %v730
      %v732 = vmul.f32 %v707, 1.442695
      %v733 = vpow.pop %v732
      %v734 = vmul.f32 %v708, 1.442695
      %v735 = vpow.pop %v734
      %v736 = vmul.f32 %v709, 1.442695
      %v737 = vpow.pop %v736
      %v738 = vmul.f32 %v710, 1.442695
      %v739 = vpow.pop %v738
      %v740 = vmul.f32 %v711, 1.442695
      %v741 = vpow.pop %v740
      %v742 = vmul.f32 %v712, 1.442695
      %v743 = vpow.pop %v742
      %v744 = vmul.f32 %v713, 1.442695
      %v745 = vpow.pop %v744
      %v746 = vsel %vm649, %v715, 0.0
      %747 = vadd.xlane.f32.xlu0 %v746
      %v748 = vpop.xlane.xlu0 %747
      %v749 = vsel %vm649, %v717, 0.0
      %750 = vadd.xlane.f32.xlu0 %v749
      %v751 = vpop.xlane.xlu0 %750
      %v752 = vsel %vm649, %v719, 0.0
      %753 = vadd.xlane.f32.xlu0 %v752
      %v754 = vpop.xlane.xlu0 %753
      %v755 = vsel %vm649, %v721, 0.0
      %756 = vadd.xlane.f32.xlu0 %v755
      %v757 = vpop.xlane.xlu0 %756
      %v758 = vsel %vm649, %v723, 0.0
      %759 = vadd.xlane.f32.xlu0 %v758
      %v760 = vpop.xlane.xlu0 %759
      %v761 = vsel %vm649, %v725, 0.0
      %762 = vadd.xlane.f32.xlu0 %v761
      %v763 = vpop.xlane.xlu0 %762
      %v764 = vsel %vm649, %v727, 0.0
      %765 = vadd.xlane.f32.xlu0 %v764
      %v766 = vpop.xlane.xlu0 %765
      %v767 = vsel %vm649, %v729, 0.0
      %768 = vadd.xlane.f32.xlu0 %v767
      %v769 = vpop.xlane.xlu0 %768
      %v770 = vsel %vm649, %v731, 0.0
      %771 = vadd.xlane.f32.xlu0 %v770
      %v772 = vpop.xlane.xlu0 %771
      %v773 = vsel %vm649, %v733, 0.0
      %774 = vadd.xlane.f32.xlu0 %v773
      %v775 = vpop.xlane.xlu0 %774
      %v776 = vsel %vm649, %v735, 0.0
      %777 = vadd.xlane.f32.xlu0 %v776
      %v778 = vpop.xlane.xlu0 %777
      %v779 = vsel %vm649, %v737, 0.0
      %780 = vadd.xlane.f32.xlu0 %v779
      %v781 = vpop.xlane.xlu0 %780
      %v782 = vsel %vm649, %v739, 0.0
      %783 = vadd.xlane.f32.xlu0 %v782
      %v784 = vpop.xlane.xlu0 %783
      %v785 = vsel %vm649, %v741, 0.0
      %786 = vadd.xlane.f32.xlu0 %v785
      %v787 = vpop.xlane.xlu0 %786
      %v788 = vsel %vm649, %v743, 0.0
      %789 = vadd.xlane.f32.xlu0 %v788
      %v790 = vpop.xlane.xlu0 %789
      %v791 = vsel %vm649, %v745, 0.0
      %792 = vadd.xlane.f32.xlu0 %v791
      %v793 = vpop.xlane.xlu0 %792
      %v794 = vrcp.pop %v748
      %v795 = vmul.f32 %v715, %v794
      %v796 = vrcp.pop %v751
      %v797 = vmul.f32 %v717, %v796
      %v798 = vrcp.pop %v754
      %v799 = vmul.f32 %v719, %v798
      %v800 = vrcp.pop %v757
      %v801 = vmul.f32 %v721, %v800
      %v802 = vrcp.pop %v760
      %v803 = vmul.f32 %v723, %v802
      %v804 = vrcp.pop %v763
      %v805 = vmul.f32 %v725, %v804
      %v806 = vrcp.pop %v766
      %v807 = vmul.f32 %v727, %v806
      %v808 = vrcp.pop %v769
      %v809 = vmul.f32 %v729, %v808
      %v810 = vrcp.pop %v772
      %v811 = vmul.f32 %v731, %v810
      %v812 = vrcp.pop %v775
      %v813 = vmul.f32 %v733, %v812
      %v814 = vrcp.pop %v778
      %v815 = vmul.f32 %v735, %v814
      %v816 = vrcp.pop %v781
      %v817 = vmul.f32 %v737, %v816
      %v818 = vrcp.pop %v784
      %v819 = vmul.f32 %v739, %v818
      %v820 = vrcp.pop %v787
      %v821 = vmul.f32 %v741, %v820
      %v822 = vrcp.pop %v790
      %v823 = vmul.f32 %v743, %v822
      %v824 = vrcp.pop %v793
      %v825 = vmul.f32 %v745, %v824
      %v826 = vadd.f32 %v795, 1e-06
      %v827 = vadd.f32 %v797, 1e-06
      %v828 = vadd.f32 %v799, 1e-06
      %v829 = vadd.f32 %v801, 1e-06
      %v830 = vadd.f32 %v803, 1e-06
      %v831 = vadd.f32 %v805, 1e-06
      %v832 = vadd.f32 %v807, 1e-06
      %v833 = vadd.f32 %v809, 1e-06
      %v834 = vadd.f32 %v811, 1e-06
      %v835 = vadd.f32 %v813, 1e-06
      %v836 = vadd.f32 %v815, 1e-06
      %v837 = vadd.f32 %v817, 1e-06
      %v838 = vadd.f32 %v819, 1e-06
      %v839 = vadd.f32 %v821, 1e-06
      %v840 = vadd.f32 %v823, 1e-06
      %v841 = vadd.f32 %v825, 1e-06
      %v842 = vmul.f32 %v826, 0.999984
      %v843 = vmul.f32 %v827, 0.999984
      %v844 = vmul.f32 %v828, 0.999984
      %v845 = vmul.f32 %v829, 0.999984
      %v846 = vmul.f32 %v830, 0.999984
      %v847 = vmul.f32 %v831, 0.999984
      %v848 = vmul.f32 %v832, 0.999984
      %v849 = vmul.f32 %v833, 0.999984
      %v850 = vmul.f32 %v834, 0.999984
      %v851 = vmul.f32 %v835, 0.999984
      %v852 = vmul.f32 %v836, 0.999984
      %v853 = vmul.f32 %v837, 0.999984
      %v854 = vmul.f32 %v838, 0.999984
      %v855 = vmul.f32 %v839, 0.999984
      %v856 = vmul.f32 %v840, 0.999984
      %v857 = vmul.f32 %v841, 0.999984
      %v858 = vsel %vm649, %v842, 0.0
      %v859 = vsel %vm649, %v843, 0.0
      %v860 = vadd.f32 %v858, %v859
      %v861 = vsel %vm649, %v844, 0.0
      %v862 = vadd.f32 %v860, %v861
      %v863 = vsel %vm649, %v845, 0.0
      %v864 = vadd.f32 %v862, %v863
      %v865 = vsel %vm649, %v846, 0.0
      %v866 = vadd.f32 %v864, %v865
      %v867 = vsel %vm649, %v847, 0.0
      %v868 = vadd.f32 %v866, %v867
      %v869 = vsel %vm649, %v848, 0.0
      %v870 = vadd.f32 %v868, %v869
      %v871 = vsel %vm649, %v849, 0.0
      %v872 = vadd.f32 %v870, %v871
      %v873 = vsel %vm649, %v850, 0.0
      %v874 = vadd.f32 %v872, %v873
      %v875 = vsel %vm649, %v851, 0.0
      %v876 = vadd.f32 %v874, %v875
      %v877 = vsel %vm649, %v852, 0.0
      %v878 = vadd.f32 %v876, %v877
      %v879 = vsel %vm649, %v853, 0.0
      %v880 = vadd.f32 %v878, %v879
      %v881 = vsel %vm649, %v854, 0.0
      %v882 = vadd.f32 %v880, %v881
      %v883 = vsel %vm649, %v855, 0.0
      %v884 = vadd.f32 %v882, %v883
      %v885 = vsel %vm649, %v856, 0.0
      %v886 = vadd.f32 %v884, %v885
      %v887 = vsel %vm649, %v857, 0.0
      %v888 = vadd.f32 %v886, %v887
      %v889 = vrot.slane %v888, 4
      %v890 = vadd.f32 %v888, %v889
      %v891 = vrot.slane %v890, 2
      %v892 = vadd.f32 %v890, %v891
      %v893 = vrot.slane %v892, 1
      %v894 = vadd.f32 %v892, %v893
      %v895 = vmul.f32 %v842, %v301
      %v896 = vmul.f32 %v843, %v304
      %v897 = vmul.f32 %v844, %v307
      %v898 = vmul.f32 %v845, %v310
      %v899 = vmul.f32 %v846, %v313
      %v900 = vmul.f32 %v847, %v316
      %v901 = vmul.f32 %v848, %v319
      %v902 = vmul.f32 %v849, %v322
      %v903 = vmul.f32 %v850, %v325
      %v904 = vmul.f32 %v851, %v328
      %v905 = vmul.f32 %v852, %v331
      %v906 = vmul.f32 %v853, %v334
      %v907 = vmul.f32 %v854, %v337
      %v908 = vmul.f32 %v855, %v340
      %v909 = vmul.f32 %v856, %v343
      %v910 = vmul.f32 %v857, %v346
      %v911 = vsel %vm649, %v895, 0.0
      %v912 = vsel %vm649, %v896, 0.0
      %v913 = vadd.f32 %v911, %v912
      %v914 = vsel %vm649, %v897, 0.0
      %v915 = vadd.f32 %v913, %v914
      %v916 = vsel %vm649, %v898, 0.0
      %v917 = vadd.f32 %v915, %v916
      %v918 = vsel %vm649, %v899, 0.0
      %v919 = vadd.f32 %v917, %v918
      %v920 = vsel %vm649, %v900, 0.0
      %v921 = vadd.f32 %v919, %v920
      %v922 = vsel %vm649, %v901, 0.0
      %v923 = vadd.f32 %v921, %v922
      %v924 = vsel %vm649, %v902, 0.0
      %v925 = vadd.f32 %v923, %v924
      %v926 = vsel %vm649, %v903, 0.0
      %v927 = vadd.f32 %v925, %v926
      %v928 = vsel %vm649, %v904, 0.0
      %v929 = vadd.f32 %v927, %v928
      %v930 = vsel %vm649, %v905, 0.0
      %v931 = vadd.f32 %v929, %v930
      %v932 = vsel %vm649, %v906, 0.0
      %v933 = vadd.f32 %v931, %v932
      %v934 = vsel %vm649, %v907, 0.0
      %v935 = vadd.f32 %v933, %v934
      %v936 = vsel %vm649, %v908, 0.0
      %v937 = vadd.f32 %v935, %v936
      %v938 = vsel %vm649, %v909, 0.0
      %v939 = vadd.f32 %v937, %v938
      %v940 = vsel %vm649, %v910, 0.0
      %v941 = vadd.f32 %v939, %v940
      %v942 = vrot.slane %v941, 4
      %v943 = vadd.f32 %v941, %v942
      %v944 = vrot.slane %v943, 2
      %v945 = vadd.f32 %v943, %v944
      %v946 = vrot.slane %v945, 1
      %v947 = vadd.f32 %v945, %v946
      %v948 = vmul.f32 %v842, %v587
      %v949 = vmul.f32 %v843, %v588
      %v950 = vmul.f32 %v844, %v589
      %v951 = vmul.f32 %v845, %v590
      %v952 = vmul.f32 %v846, %v591
      %v953 = vmul.f32 %v847, %v592
      %v954 = vmul.f32 %v848, %v593
      %v955 = vmul.f32 %v849, %v594
      %v956 = vmul.f32 %v850, %v595
      %v957 = vmul.f32 %v851, %v596
      %v958 = vmul.f32 %v852, %v597
      %v959 = vmul.f32 %v853, %v598
      %v960 = vmul.f32 %v854, %v599
      %v961 = vmul.f32 %v855, %v600
      %v962 = vmul.f32 %v856, %v601
      %v963 = vmul.f32 %v857, %v602
      %v964 = vsel %vm649, %v948, 0.0
      %v965 = vsel %vm649, %v949, 0.0
      %v966 = vadd.f32 %v964, %v965
      %v967 = vsel %vm649, %v950, 0.0
      %v968 = vadd.f32 %v966, %v967
      %v969 = vsel %vm649, %v951, 0.0
      %v970 = vadd.f32 %v968, %v969
      %v971 = vsel %vm649, %v952, 0.0
      %v972 = vadd.f32 %v970, %v971
      %v973 = vsel %vm649, %v953, 0.0
      %v974 = vadd.f32 %v972, %v973
      %v975 = vsel %vm649, %v954, 0.0
      %v976 = vadd.f32 %v974, %v975
      %v977 = vsel %vm649, %v955, 0.0
      %v978 = vadd.f32 %v976, %v977
      %v979 = vsel %vm649, %v956, 0.0
      %v980 = vadd.f32 %v978, %v979
      %v981 = vsel %vm649, %v957, 0.0
      %v982 = vadd.f32 %v980, %v981
      %v983 = vsel %vm649, %v958, 0.0
      %v984 = vadd.f32 %v982, %v983
      %v985 = vsel %vm649, %v959, 0.0
      %v986 = vadd.f32 %v984, %v985
      %v987 = vsel %vm649, %v960, 0.0
      %v988 = vadd.f32 %v986, %v987
      %v989 = vsel %vm649, %v961, 0.0
      %v990 = vadd.f32 %v988, %v989
      %v991 = vsel %vm649, %v962, 0.0
      %v992 = vadd.f32 %v990, %v991
      %v993 = vsel %vm649, %v963, 0.0
      %v994 = vadd.f32 %v992, %v993
      %v995 = vrot.slane %v994, 4
      %v996 = vadd.f32 %v994, %v995
      %v997 = vrot.slane %v996, 2
      %v998 = vadd.f32 %v996, %v997
      %v999 = vrot.slane %v998, 1
      %v1000 = vadd.f32 %v998, %v999
      %vm1001 = vcmask 1040384
      %v1002 = vsel %vm1001, %v894, %v947
      %vm1003 = vcmask 1041408
      %v1004 = vsel %vm1003, %v1002, %v1000
      %v1005 = vld [vmem:[%s259] sm:$0x7]
      %v1006 = vadd.f32 %v1005, %v1004
      %vm1007 = vcmask 116736
      %1008 = vst.msk [vmem:[%s259] sm:$0x7] %vm1007, %v1006
      %p1009 = scmp.lt.s32.totalorder %s19, 1
      %s1010 = scalar_select %p1009, %s19, 1
      %s1011 = smul.addr %s1010, 4
      %s1012 = scalar_lea.vmem %s4, %s1011
      // Predicated region
      $region41: #{tpu_custom_call.1} parent=35 // pred_check
        %p1013 = pneg %p147
      $region42: #{tpu_custom_call.1} parent=35 // pred_check_branch
        %1015 = sbr.rel (%p1013) target = $region44
      $region43: #{tpu_custom_call.1} parent=35 // pred_region
        _
      $region44: #{tpu_custom_call.1} parent=35 // pred_fallthru
        _
    $region36: #{tpu_custom_call.1} parent=5 // pred_fallthru
      _
    %p1016 = scmp.le.s32.totalorder 2, %s10
    // Predicated region
    $region45: #{tpu_custom_call.1} parent=5 // pred_check
      %p1017 = pneg %p1016
    $region46: #{tpu_custom_call.1} parent=5 // pred_check_branch
      %1019 = sbr.rel (%p1017) target = $region48
    $region47: #{tpu_custom_call.1} parent=5 // pred_region
      %s1020 = ssub.s32 %s10, 2
      // Predicated region
      $region49: #{tpu_custom_call.1} parent=47 // pred_check
        %p1021 = pneg %p153
      $region50: #{tpu_custom_call.1} parent=47 // pred_check_branch
        %1023 = sbr.rel (%p1021) target = $region52
      $region51: #{tpu_custom_call.1} parent=47 // pred_region
        %p1024 = scmp.lt.s32.totalorder %s21, 1
        %s1025 = scalar_select %p1024, %s21, 1
        %s1026 = smul.addr %s1025, 4
        %s1027 = scalar_lea.vmem %s4, %s1026
      $region52: #{tpu_custom_call.1} parent=47 // pred_fallthru
        _
    $region48: #{tpu_custom_call.1} parent=5 // pred_fallthru
      _
  $region6: #{tpu_custom_call.1} parent=0 // loop_footer
    %s14 = sadd.s32 1, %s10
  $region7: #{tpu_custom_call.1} parent=0 // loop_footer_branch
    %9 = sbr.rel target = $region3
  $region8: #{tpu_custom_call.1} parent=0 // loop_exit
    _

</llo_original>
